<compile_context>
chip_gen: v6e
topology: v6e:2x2x1
jax: 0.10.0
libtpu: 0.0.40
codegen_flags: <defaults>
</compile_context>

<pallas_src>
import functools

import jax
import jax.numpy as jnp
from jax import lax
from jax.experimental import pallas as pl
from jax.experimental.pallas import tpu as pltpu

ALPHA = 0.5
EPS = 1e-6


def _dice_bce_kernel(yt_ref, yp_ref, inter_o, union_o, bce_o, *,
                     rows, cw, chunks_per_tile, tile_l, tiles_per_par,
                     n_valid_tiles, valid_l, need_mask, has_dead):
    """One grid step: accumulate lane-wise partials for one (rows, tile_l) tile."""
    c = pl.program_id(0)          # parallel slice (dual-TensorCore parts)
    j = pl.program_id(1)          # tile within the slice (reduction axis)

    @pl.when(j == 0)
    def _init():
        zeros = jnp.zeros((rows, cw), jnp.float32)
        inter_o[0] = zeros
        union_o[0] = zeros
        bce_o[0] = zeros

    def chunk_terms(k, mask_col0):
        # mask_col0 is a STATIC column offset (or None) marking the single
        # ragged boundary chunk whose trailing lanes hold partial-DMA garbage.
        yt = yt_ref[:, k * cw:(k + 1) * cw].astype(jnp.float32)
        x = yp_ref[:, k * cw:(k + 1) * cw].astype(jnp.float32)
        e = jnp.exp(-jnp.abs(x))                    # shared: sigmoid + softplus
        softplus = jnp.log1p(e)
        inv = 1.0 / (1.0 + e)
        p = jnp.where(x >= 0.0, inv, e * inv)       # exact sigmoid(x)
        inter_c = yt * p
        union_c = yt + p
        bce_c = jnp.maximum(x, 0.0) - x * yt + softplus   # stable BCE w/ logits
        if mask_col0 is not None:
            col = mask_col0 + lax.broadcasted_iota(jnp.int32, (rows, cw), 1)
            valid = col < valid_l
            inter_c = jnp.where(valid, inter_c, 0.0)
            union_c = jnp.where(valid, union_c, 0.0)
            bce_c = jnp.where(valid, bce_c, 0.0)
        return inter_c, union_c, bce_c

    def accumulate(last_tile):
        # vreg-resident narrow accumulators for this grid step.
        inter_a = jnp.zeros((rows, cw), jnp.float32)
        union_a = jnp.zeros((rows, cw), jnp.float32)
        bce_a = jnp.zeros((rows, cw), jnp.float32)
        tile_col0 = (n_valid_tiles - 1) * tile_l if last_tile else 0   # static
        for k in range(chunks_per_tile):
            mask_col0 = None
            if last_tile:
                col0 = tile_col0 + k * cw
                if col0 >= valid_l:
                    continue                         # chunk entirely past edge
                if col0 + cw > valid_l:
                    mask_col0 = col0                 # the single ragged chunk
            i_c, u_c, b_c = chunk_terms(k, mask_col0)
            inter_a += i_c
            union_a += u_c
            bce_a += b_c
        # One small RMW of the resident output block per grid step.
        inter_o[0] += inter_a
        union_o[0] += union_a
        bce_o[0] += bce_a

    if need_mask or has_dead:
        t = c * tiles_per_par + j                    # global tile index
        last = n_valid_tiles - 1
        if need_mask:
            if n_valid_tiles > 1:
                @pl.when(t < last)
                def _body():
                    accumulate(last_tile=False)

            @pl.when(t == last)
            def _tail():
                accumulate(last_tile=True)
            # t > last (dead rounding tiles) fall through: skipped entirely.
        else:
            @pl.when(t <= last)
            def _body():
                accumulate(last_tile=False)
    else:
        accumulate(last_tile=False)


def _choose_fold(r, l, pack):
    """Pick a divisor of `l` to fold spatial into sublanes: fill the vreg
    (r*fold >= pack) and, while folded rows keep >= 512 lanes, grow toward
    32 rows so each 128-lane chunk carries more data."""
    best = 1
    for d in range(1, min(l, 4096) + 1):
        if l % d:
            continue
        rf, lf = r * d, l // d
        if rf > 256:
            break
        if rf <= pack or lf >= 512:
            best = d
        if rf >= 32 and rf >= pack:
            break
    return best


def dice_cross_entropy_loss(y_true, y_pred, *, alpha=ALPHA, eps=EPS,
                            max_chunks_per_tile=None):
    """Binary Dice + BCE-with-logits loss.  y_true/y_pred: (N, 1, H, W).
    y_true may be a narrow dtype (bf16 / int8 / bool); the f32 cast happens
    in-kernel so no extra HBM pass is paid."""
    N, C, H, W = y_true.shape
    assert y_pred.shape == y_true.shape
    R, L = N * C, H * W

    itb = y_true.dtype.itemsize
    ipb = y_pred.dtype.itemsize
    pack = max(32 // max(itb, 1), 32 // max(ipb, 1))    # 8 f32 / 16 bf16 / 32 i8
    fold = _choose_fold(R, L, pack)
    Rf, Lf = R * fold, L // fold
    yt2 = y_true.reshape(Rf, Lf)      # native dtype; f32 cast happens in-kernel
    yp2 = y_pred.reshape(Rf, Lf)

    # Lane tiling: 128-lane chunks, several chunks per grid step (~1-2 MiB of
    # fresh HBM per step to amortize the ~0.35us per-step pipeline overhead).
    cw = 128 if Lf >= 128 else Lf
    total_chunks = pl.cdiv(Lf, cw)
    bytes_per_chunk = Rf * cw * (itb + ipb)
    chunks_per_tile = int(max(1, min(128, (2 << 20) // max(bytes_per_chunk, 1))))
    if max_chunks_per_tile is not None:
        chunks_per_tile = max(1, min(chunks_per_tile, int(max_chunks_per_tile)))
    chunks_per_tile = min(chunks_per_tile, total_chunks)
    tile_l = chunks_per_tile * cw
    n_tiles = pl.cdiv(total_chunks, chunks_per_tile)    # valid grid tiles
    need_mask = n_tiles * tile_l > Lf                   # ragged boundary tile?

    # Generation-aware parallel split: only dual-TensorCore parts benefit.
    kind = ""
    try:
        kind = jax.devices()[0].device_kind.lower()
    except Exception:
        pass
    dual_tc = any(tag in kind for tag in ("v7", "v4", "v5p"))
    n_par = 2 if (dual_tc and n_tiles >= 4) else 1
    tiles_per_par = pl.cdiv(n_tiles, n_par)
    has_dead = n_par * tiles_per_par > n_tiles          # skipped, never padded

    # VMEM budget: 2 inputs x 2 pipeline buffers + 3 resident (Rf, cw) outputs.
    # (pl.Buffered(3) on 128 MiB parts would also fit; omitted to keep the
    # pipeline simple -- the kernel already tracks the HBM roofline.)
    try:
        vmem_cap = int(pltpu.get_tpu_info().vmem_capacity_bytes)
    except Exception:
        vmem_cap = 64 << 20                             # v7x-safe fallback
    vmem_need = 2 * Rf * tile_l * (itb + ipb) + 2 * 3 * Rf * cw * 4
    vmem_limit = int(min(vmem_cap // 2, max(vmem_need + (4 << 20), 16 << 20)))

    last_idx = n_tiles - 1
    if has_dead:
        # Dead rounding tiles alias the last valid block (clean DMA, no OOB)
        # and are pl.when-skipped in the kernel.
        in_map = lambda c, j: (0, jnp.minimum(c * tiles_per_par + j, last_idx))
    else:
        in_map = lambda c, j: (0, c * tiles_per_par + j)

    kernel = functools.partial(
        _dice_bce_kernel, rows=Rf, cw=cw, chunks_per_tile=chunks_per_tile,
        tile_l=tile_l, tiles_per_par=tiles_per_par, n_valid_tiles=n_tiles,
        valid_l=Lf, need_mask=need_mask, has_dead=has_dead)

    part = jax.ShapeDtypeStruct((n_par, Rf, cw), jnp.float32)
    out_spec = pl.BlockSpec((1, Rf, cw), lambda c, j: (c, 0, 0))

    cost = pl.CostEstimate(
        flops=14 * Rf * Lf,
        transcendentals=2 * Rf * Lf,
        bytes_accessed=Rf * Lf * (itb + ipb) + 3 * n_par * Rf * cw * 4)

    inter_p, union_p, bce_p = pl.pallas_call(
        kernel,
        out_shape=(part, part, part),
        grid=(n_par, tiles_per_par),
        in_specs=[pl.BlockSpec((Rf, tile_l), in_map),
                  pl.BlockSpec((Rf, tile_l), in_map)],
        out_specs=(out_spec, out_spec, out_spec),
        compiler_params=pltpu.CompilerParams(
            dimension_semantics=("parallel", "arbitrary"),
            vmem_limit_bytes=vmem_limit),
        cost_estimate=cost,
    )(yt2, yp2)

    # Tiny epilogue in plain JAX: 3 x (n_par, Rf, 128) partials -> scalar loss.
    inter = inter_p.sum(axis=(0, 2)).reshape(R, fold).sum(axis=1)
    union = union_p.sum(axis=(0, 2)).reshape(R, fold).sum(axis=1)
    bce_total = bce_p.sum()

    dice = (2.0 * inter + eps) / (union + eps)
    dice = jnp.clip(dice, 0.0, 1.0)
    dice_loss = jnp.mean(1.0 - dice)
    ce_loss = bce_total / (R * L)
    return alpha * dice_loss + (1.0 - alpha) * ce_loss


def _reference(y_true, y_pred, *, alpha=ALPHA, eps=EPS):
    """Pure-JAX reference mirroring the PyTorch forward (num_classes=1)."""
    yt = y_true.astype(jnp.float32)
    x = y_pred.astype(jnp.float32)
    p = jax.nn.sigmoid(x)
    inter = jnp.sum(yt * p, axis=(2, 3))
    union = jnp.sum(yt, axis=(2, 3)) + jnp.sum(p, axis=(2, 3))
    dice = (2.0 * inter + eps) / (union + eps)
    dice = jnp.clip(dice, 0.0, 1.0)
    dice_loss = jnp.mean(1.0 - dice)
    bce = jnp.maximum(x, 0.0) - x * yt + jnp.log1p(jnp.exp(-jnp.abs(x)))
    ce = jnp.mean(bce)
    return alpha * dice_loss + (1.0 - alpha) * ce


if __name__ == "__main__":
    key = jax.random.PRNGKey(0)
    k1, k2 = jax.random.split(key)

    # Binary segmentation (num_classes == 1): logits + {0,1} masks, (N, C, H, W).
    N, C, H, W = 2, 1, 16, 16
    y_pred = jax.random.normal(k1, (N, C, H, W), dtype=jnp.float32)        # logits
    y_true = (jax.random.uniform(k2, (N, C, H, W)) > 0.5).astype(jnp.float32)

    loss = jax.block_until_ready(dice_cross_entropy_loss(y_true, y_pred))
    ref = jax.block_until_ready(_reference(y_true, y_pred))
    assert jnp.allclose(loss, ref, rtol=1e-5, atol=1e-5), (loss, ref)

    # Multi-tile grid + ragged boundary-tile masking (forced 1 chunk per tile).
    k3, k4 = jax.random.split(k1)
    yp_b = jax.random.normal(k3, (2, 1, 24, 24), dtype=jnp.float32)
    yt_b = (jax.random.uniform(k4, (2, 1, 24, 24)) > 0.5).astype(jnp.float32)
    loss_b = jax.block_until_ready(
        dice_cross_entropy_loss(yt_b, yp_b, max_chunks_per_tile=1))
    ref_b = jax.block_until_ready(_reference(yt_b, yp_b))
    assert jnp.allclose(loss_b, ref_b, rtol=1e-5, atol=1e-5), (loss_b, ref_b)

    # Narrow-dtype ground truth (bf16 mask holds 0/1 exactly; cast is in-kernel).
    loss_c = jax.block_until_ready(
        dice_cross_entropy_loss(y_true.astype(jnp.bfloat16), y_pred))
    assert jnp.allclose(loss_c, ref, rtol=1e-5, atol=1e-5), (loss_c, ref)

    print("KERNEL_OK")
</pallas_src>

<mosaic_0001>
module attributes {stable_mosaic.version = 11 : i64} {
  func.func @_dice_bce_kernel(%arg0: i32, %arg1: i32, %arg2: memref<8x64xf32, #tpu.memory_space<vmem>>, %arg3: memref<8x64xf32, #tpu.memory_space<vmem>>, %arg4: memref<1x8x64xf32, #tpu.memory_space<vmem>>, %arg5: memref<1x8x64xf32, #tpu.memory_space<vmem>>, %arg6: memref<1x8x64xf32, #tpu.memory_space<vmem>>) attributes {dimension_semantics = [#tpu.dimension_semantics<parallel>, #tpu.dimension_semantics<arbitrary>], iteration_bounds = array<i64: 1, 1>, scalar_prefetch = 0 : i64, scratch_operands = 0 : i64, tpu.core_type = #tpu.core_type<tc>, window_params = [{transform_indices = @transform_0, window_bounds = array<i64: 8, 64>}, {transform_indices = @transform_1, window_bounds = array<i64: 8, 64>}, {transform_indices = @transform_2, window_bounds = array<i64: 1, 8, 64>}, {transform_indices = @transform_3, window_bounds = array<i64: 1, 8, 64>}, {transform_indices = @transform_4, window_bounds = array<i64: 1, 8, 64>}]} {
    %c0_i32 = arith.constant 0 : i32
    %0 = arith.cmpi eq, %arg1, %c0_i32 : i32
    %1 = arith.extui %0 : i1 to i32
    %c0_i32_0 = arith.constant 0 : i32
    %2 = arith.cmpi ne, %1, %c0_i32_0 : i32
    scf.if %2 {
      %cst_29 = arith.constant 0.000000e+00 : f32
      %49 = vector.broadcast %cst_29 : f32 to vector<8x64xf32>
      %c0_30 = arith.constant 0 : index
      %c0_31 = arith.constant 0 : index
      %c0_32 = arith.constant 0 : index
      %50 = vector.load %arg4[%c0_30, %c0_31, %c0_32] : memref<1x8x64xf32, #tpu.memory_space<vmem>>, vector<1x8x64xf32>
      %51 = vector.shape_cast %50 : vector<1x8x64xf32> to vector<8x64xf32>
      %52 = vector.shape_cast %49 : vector<8x64xf32> to vector<1x8x64xf32>
      tpu.vector_store %arg4[%c0_30, %c0_31, %c0_32], %52 {strides = array<i32>} : memref<1x8x64xf32, #tpu.memory_space<vmem>>, vector<1x8x64xf32>,
      %c0_33 = arith.constant 0 : index
      %c0_34 = arith.constant 0 : index
      %c0_35 = arith.constant 0 : index
      %53 = vector.load %arg5[%c0_33, %c0_34, %c0_35] : memref<1x8x64xf32, #tpu.memory_space<vmem>>, vector<1x8x64xf32>
      %54 = vector.shape_cast %53 : vector<1x8x64xf32> to vector<8x64xf32>
      %55 = vector.shape_cast %49 : vector<8x64xf32> to vector<1x8x64xf32>
      tpu.vector_store %arg5[%c0_33, %c0_34, %c0_35], %55 {strides = array<i32>} : memref<1x8x64xf32, #tpu.memory_space<vmem>>, vector<1x8x64xf32>,
      %c0_36 = arith.constant 0 : index
      %c0_37 = arith.constant 0 : index
      %c0_38 = arith.constant 0 : index
      %56 = vector.load %arg6[%c0_36, %c0_37, %c0_38] : memref<1x8x64xf32, #tpu.memory_space<vmem>>, vector<1x8x64xf32>
      %57 = vector.shape_cast %56 : vector<1x8x64xf32> to vector<8x64xf32>
      %58 = vector.shape_cast %49 : vector<8x64xf32> to vector<1x8x64xf32>
      tpu.vector_store %arg6[%c0_36, %c0_37, %c0_38], %58 {strides = array<i32>} : memref<1x8x64xf32, #tpu.memory_space<vmem>>, vector<1x8x64xf32>,
    } else {
    }
    %cst = arith.constant 0.000000e+00 : f32
    %3 = vector.broadcast %cst : f32 to vector<8x64xf32>
    %cst_1 = arith.constant 0.000000e+00 : f32
    %4 = vector.broadcast %cst_1 : f32 to vector<8x64xf32>
    %cst_2 = arith.constant 0.000000e+00 : f32
    %5 = vector.broadcast %cst_2 : f32 to vector<8x64xf32>
    %c0 = arith.constant 0 : index
    %c0_3 = arith.constant 0 : index
    %6 = vector.load %arg2[%c0, %c0_3] : memref<8x64xf32, #tpu.memory_space<vmem>>, vector<8x64xf32>
    %c0_4 = arith.constant 0 : index
    %c0_5 = arith.constant 0 : index
    %7 = vector.load %arg3[%c0_4, %c0_5] : memref<8x64xf32, #tpu.memory_space<vmem>>, vector<8x64xf32>
    %8 = math.absf %7 : vector<8x64xf32>
    %cst_6 = arith.constant 0.000000e+00 : f32
    %9 = vector.broadcast %cst_6 : f32 to vector<8x64xf32>
    %10 = arith.subf %9, %8 : vector<8x64xf32>
    %11 = math.exp %10 : vector<8x64xf32>
    %12 = math.log1p %11 : vector<8x64xf32>
    %cst_7 = arith.constant 1.000000e+00 : f32
    %13 = vector.broadcast %cst_7 : f32 to vector<8x64xf32>
    %14 = arith.addf %13, %11 : vector<8x64xf32>
    %cst_8 = arith.constant 1.000000e+00 : f32
    %15 = vector.broadcast %cst_8 : f32 to vector<8x64xf32>
    %16 = arith.divf %15, %14 : vector<8x64xf32>
    %cst_9 = arith.constant 0.000000e+00 : f32
    %17 = vector.broadcast %cst_9 : f32 to vector<8x64xf32>
    %18 = arith.cmpf oge, %7, %17 : vector<8x64xf32>
    %19 = arith.mulf %11, %16 : vector<8x64xf32>
    %20 = arith.select %18, %16, %19 : vector<8x64xi1>, vector<8x64xf32>
    %21 = arith.mulf %6, %20 : vector<8x64xf32>
    %22 = arith.addf %6, %20 : vector<8x64xf32>
    %cst_10 = arith.constant 0.000000e+00 : f32
    %23 = vector.broadcast %cst_10 : f32 to vector<8x64xf32>
    %24 = arith.maximumf %7, %23 : vector<8x64xf32>
    %25 = arith.mulf %7, %6 : vector<8x64xf32>
    %26 = arith.subf %24, %25 : vector<8x64xf32>
    %27 = arith.addf %26, %12 : vector<8x64xf32>
    %28 = arith.addf %3, %21 : vector<8x64xf32>
    %29 = arith.addf %4, %22 : vector<8x64xf32>
    %30 = arith.addf %5, %27 : vector<8x64xf32>
    %c0_11 = arith.constant 0 : index
    %c0_12 = arith.constant 0 : index
    %c0_13 = arith.constant 0 : index
    %31 = vector.load %arg4[%c0_11, %c0_12, %c0_13] : memref<1x8x64xf32, #tpu.memory_space<vmem>>, vector<1x8x64xf32>
    %32 = vector.shape_cast %31 : vector<1x8x64xf32> to vector<8x64xf32>
    %33 = arith.addf %32, %28 : vector<8x64xf32>
    %c0_14 = arith.constant 0 : index
    %c0_15 = arith.constant 0 : index
    %c0_16 = arith.constant 0 : index
    %34 = vector.load %arg4[%c0_14, %c0_15, %c0_16] : memref<1x8x64xf32, #tpu.memory_space<vmem>>, vector<1x8x64xf32>
    %35 = vector.shape_cast %34 : vector<1x8x64xf32> to vector<8x64xf32>
    %36 = vector.shape_cast %33 : vector<8x64xf32> to vector<1x8x64xf32>
    tpu.vector_store %arg4[%c0_14, %c0_15, %c0_16], %36 {strides = array<i32>} : memref<1x8x64xf32, #tpu.memory_space<vmem>>, vector<1x8x64xf32>,
    %c0_17 = arith.constant 0 : index
    %c0_18 = arith.constant 0 : index
    %c0_19 = arith.constant 0 : index
    %37 = vector.load %arg5[%c0_17, %c0_18, %c0_19] : memref<1x8x64xf32, #tpu.memory_space<vmem>>, vector<1x8x64xf32>
    %38 = vector.shape_cast %37 : vector<1x8x64xf32> to vector<8x64xf32>
    %39 = arith.addf %38, %29 : vector<8x64xf32>
    %c0_20 = arith.constant 0 : index
    %c0_21 = arith.constant 0 : index
    %c0_22 = arith.constant 0 : index
    %40 = vector.load %arg5[%c0_20, %c0_21, %c0_22] : memref<1x8x64xf32, #tpu.memory_space<vmem>>, vector<1x8x64xf32>
    %41 = vector.shape_cast %40 : vector<1x8x64xf32> to vector<8x64xf32>
    %42 = vector.shape_cast %39 : vector<8x64xf32> to vector<1x8x64xf32>
    tpu.vector_store %arg5[%c0_20, %c0_21, %c0_22], %42 {strides = array<i32>} : memref<1x8x64xf32, #tpu.memory_space<vmem>>, vector<1x8x64xf32>,
    %c0_23 = arith.constant 0 : index
    %c0_24 = arith.constant 0 : index
    %c0_25 = arith.constant 0 : index
    %43 = vector.load %arg6[%c0_23, %c0_24, %c0_25] : memref<1x8x64xf32, #tpu.memory_space<vmem>>, vector<1x8x64xf32>
    %44 = vector.shape_cast %43 : vector<1x8x64xf32> to vector<8x64xf32>
    %45 = arith.addf %44, %30 : vector<8x64xf32>
    %c0_26 = arith.constant 0 : index
    %c0_27 = arith.constant 0 : index
    %c0_28 = arith.constant 0 : index
    %46 = vector.load %arg6[%c0_26, %c0_27, %c0_28] : memref<1x8x64xf32, #tpu.memory_space<vmem>>, vector<1x8x64xf32>
    %47 = vector.shape_cast %46 : vector<1x8x64xf32> to vector<8x64xf32>
    %48 = vector.shape_cast %45 : vector<8x64xf32> to vector<1x8x64xf32>
    tpu.vector_store %arg6[%c0_26, %c0_27, %c0_28], %48 {strides = array<i32>} : memref<1x8x64xf32, #tpu.memory_space<vmem>>, vector<1x8x64xf32>,
    return
  }
  func.func @transform_0(%arg0: i32, %arg1: i32) -> (i32, i32) {
    %c1_i32 = arith.constant 1 : i32
    %0 = arith.muli %arg0, %c1_i32 : i32
    %1 = arith.addi %0, %arg1 : i32
    %c0_i32 = arith.constant 0 : i32
    %c0_i32_0 = arith.constant 0 : i32
    return %c0_i32, %1 : i32, i32
  }
  func.func @transform_1(%arg0: i32, %arg1: i32) -> (i32, i32) {
    %c1_i32 = arith.constant 1 : i32
    %0 = arith.muli %arg0, %c1_i32 : i32
    %1 = arith.addi %0, %arg1 : i32
    %c0_i32 = arith.constant 0 : i32
    %c0_i32_0 = arith.constant 0 : i32
    return %c0_i32, %1 : i32, i32
  }
  func.func @transform_2(%arg0: i32, %arg1: i32) -> (i32, i32, i32) {
    %c0_i32 = arith.constant 0 : i32
    %c0_i32_0 = arith.constant 0 : i32
    %c0_i32_1 = arith.constant 0 : i32
    return %arg0, %c0_i32, %c0_i32_0 : i32, i32, i32
  }
  func.func @transform_3(%arg0: i32, %arg1: i32) -> (i32, i32, i32) {
    %c0_i32 = arith.constant 0 : i32
    %c0_i32_0 = arith.constant 0 : i32
    %c0_i32_1 = arith.constant 0 : i32
    return %arg0, %c0_i32, %c0_i32_0 : i32, i32, i32
  }
  func.func @transform_4(%arg0: i32, %arg1: i32) -> (i32, i32, i32) {
    %c0_i32 = arith.constant 0 : i32
    %c0_i32_0 = arith.constant 0 : i32
    %c0_i32_1 = arith.constant 0 : i32
    return %arg0, %c0_i32, %c0_i32_0 : i32, i32, i32
  }
}

</mosaic_0001>

<llo_original>
// kernel: tpu_custom_call.1
$region0: #{tpu_custom_call.1}
  #allocation0 [shape = 'u32[]', space=smem, size = 0x4, offset = 0x4, fixed_abs, tag = 'smem constant byte address 0x4 - core index']
  #allocation1 [shape = 'u32[144,128]{1,0:T(1,128)}', space=vmem, size = 0x12000, scoped, tag = 'internal scratch']
  %s0 = inlined_call_operand.hbm [shape: f32[8,64], index: 0, kind: input, shape index: {}]
  %s1 = inlined_call_operand.hbm [shape: f32[8,64], index: 1, kind: input, shape index: {}]
  %s2 = inlined_call_operand.hbm [shape: f32[1,8,64], index: 2, kind: output, shape index: {0}]
  %s3 = inlined_call_operand.hbm [shape: f32[1,8,64], index: 3, kind: output, shape index: {1}]
  %s4 = inlined_call_operand.hbm [shape: f32[1,8,64], index: 4, kind: output, shape index: {2}]
  %5 = xla_tuple %s2, %s3, %s4
  %s6 = sld [smem:[#allocation0]]
  $region46: #{tpu_custom_call.1} parent=0
    _
  %s8 = ssub.s32 1, %s6
  %s9 = scalar_select 0, %s8, %s6
  $region1: #{tpu_custom_call.1} parent=0
    #allocation2 [shape = 'u8[4096]{0}', space=vmem, size = 0x1000, scoped, tag = 'input window, operand 0, single buffered']
    #allocation3 [shape = 's32[1]{0}', space=sflag, size = 0x4, scoped, tag = 'scoped memory for tpu_custom_call.1']
    #allocation4 [shape = 's32[1]{0}', space=sflag, size = 0x4, scoped, tag = 'scoped memory for tpu_custom_call.1']
    #allocation5 [shape = 'u8[4096]{0}', space=vmem, size = 0x1000, scoped, tag = 'input window, operand 1, single buffered']
    #allocation6 [shape = 's32[1]{0}', space=sflag, size = 0x4, scoped, tag = 'scoped memory for tpu_custom_call.1']
    #allocation7 [shape = 'u8[4096]{0}', space=vmem, size = 0x1000, scoped, tag = 'output window, operand 0, single buffered']
    #allocation8 [shape = 'u8[4096]{0}', space=vmem, size = 0x1000, scoped, tag = 'output window, operand 1, single buffered']
    #allocation9 [shape = 's32[1]{0}', space=sflag, size = 0x4, scoped, tag = 'scoped memory for tpu_custom_call.1']
    #allocation10 [shape = 'u8[4096]{0}', space=vmem, size = 0x1000, scoped, tag = 'output window, operand 2, single buffered']
    %10 = vsyncpa [#allocation3], 0
    %11 = vsyncpa [#allocation6], 0
    %12 = vsyncpa [#allocation4], 0
    %13 = vsyncpa [#allocation9], 0
    // Predicated region
    $region2: #{tpu_custom_call.1} parent=1 // pred_check
      _
    $region3: #{tpu_custom_call.1} parent=1 // pred_check_branch
      %15 = sbr.rel (0) target = $region5
    $region4: #{tpu_custom_call.1} parent=1 // pred_region
      %s16 = sadd.s32 0, 0
      %s18 = ssub.s32 128, 128
      %19 = vsyncadd [#allocation3], %s18
      %s20 = smul.addr %s16, 128
      %s21 = scalar_lea.hbm %s0, %s20
      %s23 = sshll.u32 [#allocation2], 4
      %s24 = int_to_ptr.vmem [resolvable:$true] %s23
      %26 = dma.hbm_to_vmem [thread:$0]  %s21, 128, %s24, [#allocation3]
    $region5: #{tpu_custom_call.1} parent=1 // pred_fallthru
      _
    // Predicated region
    $region6: #{tpu_custom_call.1} parent=1 // pred_check
      _
    $region7: #{tpu_custom_call.1} parent=1 // pred_check_branch
      %28 = sbr.rel (0) target = $region9
    $region8: #{tpu_custom_call.1} parent=1 // pred_region
      %s29 = sadd.s32 0, 0
      %s31 = ssub.s32 128, 128
      %32 = vsyncadd [#allocation6], %s31
      %s33 = smul.addr %s29, 128
      %s34 = scalar_lea.hbm %s1, %s33
      %s36 = sshll.u32 [#allocation5], 4
      %s37 = int_to_ptr.vmem [resolvable:$true] %s36
      %39 = dma.hbm_to_vmem [thread:$0]  %s34, 128, %s37, [#allocation6]
    $region9: #{tpu_custom_call.1} parent=1 // pred_fallthru
      _
    // Predicated region
    $region10: #{tpu_custom_call.1} parent=1 // pred_check
      _
    $region11: #{tpu_custom_call.1} parent=1 // pred_check_branch
      %41 = sbr.rel (0) target = $region13
    $region12: #{tpu_custom_call.1} parent=1 // pred_region
      %42 = dma.done [#allocation3], 128
    $region13: #{tpu_custom_call.1} parent=1 // pred_fallthru
      _
    // Predicated region
    $region14: #{tpu_custom_call.1} parent=1 // pred_check
      _
    $region15: #{tpu_custom_call.1} parent=1 // pred_check_branch
      %44 = sbr.rel (0) target = $region17
    $region16: #{tpu_custom_call.1} parent=1 // pred_region
      %45 = dma.done [#allocation6], 128
    $region17: #{tpu_custom_call.1} parent=1 // pred_fallthru
      _
    %s46 = sadd.s32 0, 0
    %s47 = sadd.s32 0, 0
    %p48 = scmp.eq.s32.totalorder 0, 0
    // Predicated region
    $region18: #{tpu_custom_call.1} parent=1 // pred_check
      %p49 = pneg %p48
    $region19: #{tpu_custom_call.1} parent=1 // pred_check_branch
      %51 = sbr.rel (%p49) target = $region21
    $region20: #{tpu_custom_call.1} parent=1 // pred_region
      %vm52 = vcmask 523264
      %53 = vst.msk [vmem:[#allocation7] sm:$0xff] %vm52, 0.0
      %54 = vst.msk [vmem:[#allocation8] sm:$0xff] %vm52, 0.0
      %55 = vst.msk [vmem:[#allocation10] sm:$0xff] %vm52, 0.0
    $region21: #{tpu_custom_call.1} parent=1 // pred_fallthru
      _
    %v56 = vld [vmem:[#allocation2] sm:$0xff]
    %v57 = vld [vmem:[#allocation5] sm:$0xff]
    %v58 = vand.u32 2147483647, %v57
    %v59 = vsub.f32 0.0, %v58
    %v60 = vmul.f32 %v59, 1.442695
    %v61 = vpow.pop %v60
    %v62 = vadd.f32 %v61, 1.0
    %v63 = vlog2.pop %v62
    %v64 = vmul.f32 %v63, 0.6931472
    %v65 = vmul.f32 -0.5, %v61
    %v66 = vadd.f32 %v65, 1.0
    %v67 = vmul.f32 %v66, %v61
    %v68 = vand.u32 2147483647, %v61
    %vm69 = vcmp.lt.f32.partialorder %v68, 0.0004427343
    %v70 = vsel %vm69, %v67, %v64
    %v71 = vadd.f32 %v61, 1.0
    %v72 = vrcp.pop %v71
    %v73 = vmul.f32 1.0, %v72
    %vm74 = vcmp.ge.f32.partialorder %v57, 0.0
    %v75 = vmul.f32 %v61, %v73
    %v76 = vsel %vm74, %v73, %v75
    %v77 = vmul.f32 %v56, %v76
    %v78 = vadd.f32 %v56, %v76
    %v79 = vmax.f32 %v57, 0.0
    %v80 = vmul.f32 %v57, %v56
    %v81 = vsub.f32 %v79, %v80
    %v82 = vadd.f32 %v81, %v70
    %v83 = vadd.f32 %v77, 0.0
    %v84 = vadd.f32 %v78, 0.0
    %v85 = vadd.f32 %v82, 0.0
    %v86 = vld [vmem:[#allocation7] sm:$0xff]
    %v87 = vadd.f32 %v86, %v83
    %vm88 = vcmask 523264
    %89 = vst.msk [vmem:[#allocation7] sm:$0xff] %vm88, %v87
    %v90 = vld [vmem:[#allocation8] sm:$0xff]
    %v91 = vadd.f32 %v90, %v84
    %92 = vst.msk [vmem:[#allocation8] sm:$0xff] %vm88, %v91
    %v93 = vld [vmem:[#allocation10] sm:$0xff]
    %v94 = vadd.f32 %v93, %v85
    %95 = vst.msk [vmem:[#allocation10] sm:$0xff] %vm88, %v94
    // Predicated region
    $region22: #{tpu_custom_call.1} parent=1 // pred_check
      _
    $region23: #{tpu_custom_call.1} parent=1 // pred_check_branch
      %97 = sbr.rel (0) target = $region25
    $region24: #{tpu_custom_call.1} parent=1 // pred_region
      %s99 = ssub.s32 128, 128
      %100 = vsyncadd [#allocation4], %s99
      %s102 = sshll.u32 [#allocation7], 4
      %s103 = int_to_ptr.vmem [resolvable:$true] %s102
      %105 = dma.vmem_to_hbm [thread:$0]  %s103, 128, %s2, [#allocation4]
    $region25: #{tpu_custom_call.1} parent=1 // pred_fallthru
      _
    // Predicated region
    $region26: #{tpu_custom_call.1} parent=1 // pred_check
      _
    $region27: #{tpu_custom_call.1} parent=1 // pred_check_branch
      %107 = sbr.rel (0) target = $region29
    $region28: #{tpu_custom_call.1} parent=1 // pred_region
      %s109 = ssub.s32 128, 128
      %110 = vsyncadd [#allocation9], %s109
      %s112 = sshll.u32 [#allocation8], 4
      %s113 = int_to_ptr.vmem [resolvable:$true] %s112
      %115 = dma.vmem_to_hbm [thread:$0]  %s113, 128, %s3, [#allocation9]
    $region29: #{tpu_custom_call.1} parent=1 // pred_fallthru
      _
    // Predicated region
    $region30: #{tpu_custom_call.1} parent=1 // pred_check
      _
    $region31: #{tpu_custom_call.1} parent=1 // pred_check_branch
      %117 = sbr.rel (0) target = $region33
    $region32: #{tpu_custom_call.1} parent=1 // pred_region
      %s119 = ssub.s32 128, 128
      %120 = vsyncadd [#allocation9], %s119
      %s122 = sshll.u32 [#allocation10], 4
      %s123 = int_to_ptr.vmem [resolvable:$true] %s122
      %125 = dma.vmem_to_hbm [thread:$0]  %s123, 128, %s4, [#allocation9]
    $region33: #{tpu_custom_call.1} parent=1 // pred_fallthru
      _
    // Predicated region
    $region34: #{tpu_custom_call.1} parent=1 // pred_check
      _
    $region35: #{tpu_custom_call.1} parent=1 // pred_check_branch
      %127 = sbr.rel (0) target = $region37
    $region36: #{tpu_custom_call.1} parent=1 // pred_region
      %128 = dma.done [#allocation4], 128
    $region37: #{tpu_custom_call.1} parent=1 // pred_fallthru
      _
    // Predicated region
    $region38: #{tpu_custom_call.1} parent=1 // pred_check
      _
    $region39: #{tpu_custom_call.1} parent=1 // pred_check_branch
      %130 = sbr.rel (0) target = $region41
    $region40: #{tpu_custom_call.1} parent=1 // pred_region
      %131 = dma.done [#allocation9], 128
    $region41: #{tpu_custom_call.1} parent=1 // pred_fallthru
      _
    // Predicated region
    $region42: #{tpu_custom_call.1} parent=1 // pred_check
      _
    $region43: #{tpu_custom_call.1} parent=1 // pred_check_branch
      %133 = sbr.rel (0) target = $region45
    $region44: #{tpu_custom_call.1} parent=1 // pred_region
      %134 = dma.done [#allocation9], 128
    $region45: #{tpu_custom_call.1} parent=1 // pred_fallthru
      _
    %135 = vsyncpa [#allocation3], 1
    %136 = vsyncpa [#allocation6], 1
    %137 = vsyncpa [#allocation4], 1
    %138 = vsyncpa [#allocation9], 1

</llo_original>
